<compile_context>
chip_gen: v6e
topology: v6e:2x2x1
jax: 0.10.0
libtpu: 0.0.40
codegen_flags: <defaults>
</compile_context>

<pallas_src>
import functools

import jax
import jax.numpy as jnp
from jax import lax
from jax.experimental import pallas as pl
from jax.experimental.pallas import tpu as pltpu

EPS = 1e-5
_SQRT2_INV = 0.7071067811865476
_SQRT_2_OVER_PI = 0.7978845608028654


def _gelu_erf(x):
    # PyTorch default GELU (erf form) -- long polynomial on the VALU
    return 0.5 * x * (1.0 + lax.erf(x * _SQRT2_INV))


def _gelu_tanh(x):
    # tanh-approximate GELU: the transcendental runs in the EUP slot (free w.r.t. VALU)
    return 0.5 * x * (1.0 + jnp.tanh(_SQRT_2_OVER_PI * (x + 0.044715 * x * x * x)))


# --------------------------------------------------------------------------- #
# Kernel: 4 MXU dots + bias + GELU per layer.  BN already folded into weights.
# --------------------------------------------------------------------------- #
def _classifier_kernel(spec_ref, aud_ref,
                       ws_ref, wa_ref, c1_ref,
                       w2_ref, c2_ref,
                       w3_ref, c3_ref,
                       w4_ref, c4_ref,
                       out_ref, *, approx_gelu):
    act = _gelu_tanh if approx_gelu else _gelu_erf
    f32 = jnp.float32

    # frozen spec/audio projections + Linear(512,256) + BN(256), pre-folded offline
    h = jnp.dot(spec_ref[...], ws_ref[...], preferred_element_type=f32)
    h = h + jnp.dot(aud_ref[...], wa_ref[...], preferred_element_type=f32)
    h = act(h + c1_ref[...])          # Dropout: identity at inference

    # Linear(256,128) + BN(128) folded
    h = jnp.dot(h.astype(w2_ref.dtype), w2_ref[...], preferred_element_type=f32)
    h = act(h + c2_ref[...])

    # Linear(128,64) + BN(64) folded, output zero-padded to 128 lanes (GELU(0)==0 -> inert)
    h = jnp.dot(h.astype(w3_ref.dtype), w3_ref[...], preferred_element_type=f32)
    h = act(h + c3_ref[...])

    # final Linear(64, out_dim) padded to (128, opad) -> lane-dense store
    out_ref[...] = (jnp.dot(h.astype(w4_ref.dtype), w4_ref[...],
                            preferred_element_type=f32)
                    + c4_ref[...]).astype(out_ref.dtype)


# --------------------------------------------------------------------------- #
# Offline parameter folding (BN + frozen projections + lane padding)
# --------------------------------------------------------------------------- #
def _pad_axis(x, axis, new_size):
    pad = [(0, 0)] * x.ndim
    pad[axis] = (0, new_size - x.shape[axis])
    return jnp.pad(x, pad)


def fold_params(params, compute_dtype=jnp.bfloat16):
    f32 = jnp.float32

    def bn_fold(g, b, m, v):
        s = g * lax.rsqrt(v + EPS)
        return s, b - m * s

    s1, c1 = bn_fold(params["g1"], params["b1"], params["m1"], params["v1"])
    s2, c2 = bn_fold(params["g2"], params["b2"], params["m2"], params["v2"])
    s3, c3 = bn_fold(params["g3"], params["b3"], params["m3"], params["v3"])

    w1f = params["w1"] * s1            # (512, 256)  BN1 folded into Linear1
    w2f = params["w2"] * s2            # (256, 128)
    w3f = params["w3"] * s3            # (128, 64)

    # frozen projections folded with Linear1.  Width mean-pool stays in the wrapper
    # (one jnp.mean), so ws keeps its small (C*H, 256) shape instead of (C*H*W, 256).
    ws = params["w_spec"] @ w1f[:256, :]       # (C*H, 256)
    wa = params["w_audio"] @ w1f[256:, :]      # (T,   256)

    # lane-dense contraction dims: pad K to multiples of 128 (zero rows are inert;
    # wrapper zero-pads the matching activation columns).
    ks_pad = 128 * pl.cdiv(ws.shape[0], 128)
    t_pad = 128 * pl.cdiv(wa.shape[0], 128)
    ws = _pad_axis(ws, 0, ks_pad)
    wa = _pad_axis(wa, 0, t_pad)

    # lane-dense layer 3: pad 64 -> 128 output lanes (bias pad = 0 -> GELU(0) = 0)
    w3p = _pad_axis(w3f, 1, 128)               # (128, 128)
    c3p = _pad_axis(c3, 1, 128)                # (1, 128)

    # lane-dense final layer: zero-pad input rows 64 -> 128, output to multiple of 128
    out_dim = params["w4"].shape[1]
    opad = 128 * pl.cdiv(out_dim, 128)
    w4p = _pad_axis(_pad_axis(params["w4"], 0, 128), 1, opad)   # (128, opad)
    c4p = _pad_axis(params["b4"], 1, opad)                      # (1, opad)

    cd = compute_dtype
    return {
        "ws": ws.astype(cd), "wa": wa.astype(cd), "c1": c1.astype(f32),
        "w2": w2f.astype(cd), "c2": c2.astype(f32),
        "w3": w3p.astype(cd), "c3": c3p.astype(f32),
        "w4": w4p.astype(cd), "c4": c4p.astype(f32),
        "out_dim": out_dim,
        "k_spec": params["w_spec"].shape[0],
        "k_audio": params["w_audio"].shape[0],
    }
    # TODO(synk): optional fp8 ws on v7x (per-channel scaled) would halve resident
    # weight bytes and double MXU rate for the dominant dot; needs a validation pass.


# --------------------------------------------------------------------------- #
# Wrapper: batch grid, resident weights, lane-dense padded output
# --------------------------------------------------------------------------- #
def heterogeneous_classifier_forward(audio_input, spec_input, folded,
                                     *, block_b=1024, compute_dtype=jnp.bfloat16,
                                     approx_gelu=True):
    B, C, H, W = spec_input.shape
    T = audio_input.shape[1]
    k_spec, k_aud = folded["k_spec"], folded["k_audio"]
    assert k_spec == C * H and k_aud == T
    ks_pad = folded["ws"].shape[0]
    t_pad = folded["wa"].shape[0]
    out_dim = folded["out_dim"]
    opad = folded["w4"].shape[1]

    # width mean-pool in the wrapper (single XLA reduce); layer-1 weight stays small
    spec = jnp.mean(spec_input, axis=3).reshape(B, k_spec).astype(compute_dtype)
    aud = audio_input.astype(compute_dtype)

    # zero-pad feature dims to match the lane-dense padded weights
    if ks_pad != k_spec:
        spec = jnp.pad(spec, ((0, 0), (0, ks_pad - k_spec)))
    if t_pad != T:
        aud = jnp.pad(aud, ((0, 0), (0, t_pad - T)))

    # batch tile: multiple of 16 sublanes (bf16 packs 16 rows/vreg), large by default
    # (amortizes ~0.35us/step overhead), split into >=2 tiles when B allows so both
    # v7x TensorCores get work under dimension_semantics=("parallel",).
    tb = min(block_b, 16 * pl.cdiv(B, 16))
    if B >= 32 and pl.cdiv(B, tb) < 2:
        tb = 16 * pl.cdiv(pl.cdiv(B, 2), 16)
    tb = max(16, 16 * pl.cdiv(tb, 16))
    b_pad = tb * pl.cdiv(B, tb)
    if b_pad != B:
        spec = jnp.pad(spec, ((0, b_pad - B), (0, 0)))
        aud = jnp.pad(aud, ((0, b_pad - B), (0, 0)))

    weights = (folded["ws"], folded["wa"], folded["c1"],
               folded["w2"], folded["c2"],
               folded["w3"], folded["c3"],
               folded["w4"], folded["c4"])

    act_spec = lambda k: pl.BlockSpec((tb, k), lambda i: (i, 0))   # tiled over batch
    res_spec = lambda a: pl.BlockSpec(a.shape, lambda i: (0, 0))   # resident weights
    # TODO(synk): pipeline_mode=pl.Buffered(1) on the resident weights would halve their
    # VMEM; skipped since post-unfold weights are < 1 MiB at realistic shapes.

    # VMEM limit ~2x the estimated working set, clamped to [32 MiB, 64 MiB]
    # (safe on v7x's 64 MiB physical VMEM, ample headroom on v5e/v6e).
    isz = jnp.dtype(compute_dtype).itemsize
    est = (2 * tb * (ks_pad + t_pad) * isz           # double-buffered activations
           + 2 * tb * opad * 4                       # double-buffered f32 output
           + 2 * sum(int(w.size) * w.dtype.itemsize for w in weights))
    vmem_limit = int(min(64 << 20, max(32 << 20, 2 * est)))

    out = pl.pallas_call(
        functools.partial(_classifier_kernel, approx_gelu=approx_gelu),
        out_shape=jax.ShapeDtypeStruct((b_pad, opad), jnp.float32),
        grid=(b_pad // tb,),
        in_specs=[act_spec(ks_pad), act_spec(t_pad)] + [res_spec(w) for w in weights],
        out_specs=pl.BlockSpec((tb, opad), lambda i: (i, 0)),
        compiler_params=pltpu.CompilerParams(
            dimension_semantics=("parallel",),       # shards batch tiles across v7x TCs
            vmem_limit_bytes=vmem_limit,
        ),
    )(spec, aud, *weights)

    return out[:B, :out_dim]


# --------------------------------------------------------------------------- #
# Pure-JAX f32 reference of the ORIGINAL (unfolded) math, for correctness check
# --------------------------------------------------------------------------- #
def _reference_forward(audio_input, spec_input, params):
    B, C, H, W = spec_input.shape
    spec_pooled = jnp.mean(spec_input, axis=3).reshape(B, C * H)
    spec_feat = spec_pooled @ params["w_spec"]
    aud_feat = audio_input @ params["w_audio"]
    x = jnp.concatenate([spec_feat, aud_feat], axis=1)

    def block(h, w, g, b, m, v):
        h = h @ w
        h = (h - m) / jnp.sqrt(v + EPS) * g + b
        return jax.nn.gelu(h, approximate=False)     # PyTorch default exact-erf GELU

    h = block(x, params["w1"], params["g1"], params["b1"], params["m1"], params["v1"])
    h = block(h, params["w2"], params["g2"], params["b2"], params["m2"], params["v2"])
    h = block(h, params["w3"], params["g3"], params["b3"], params["m3"], params["v3"])
    return h @ params["w4"] + params["b4"]


def _init_params(key, spec_in_dim, audio_in_dim, output_dim):
    ks = jax.random.split(key, 16)

    def lin(k, fan_in, fan_out):
        return jax.random.normal(k, (fan_in, fan_out), jnp.float32) / jnp.sqrt(fan_in)

    def bn(k, dim):
        km, kv = jax.random.split(k)
        return dict(
            g=jnp.ones((1, dim), jnp.float32),
            b=jnp.zeros((1, dim), jnp.float32),
            m=0.1 * jax.random.normal(km, (1, dim), jnp.float32),
            v=1.0 + 0.1 * jnp.abs(jax.random.normal(kv, (1, dim), jnp.float32)),
        )

    bn1, bn2, bn3 = bn(ks[5], 256), bn(ks[6], 128), bn(ks[7], 64)
    return {
        "w_spec": lin(ks[0], spec_in_dim, 256),
        "w_audio": lin(ks[1], audio_in_dim, 256),
        "w1": lin(ks[2], 512, 256),
        "g1": bn1["g"], "b1": bn1["b"], "m1": bn1["m"], "v1": bn1["v"],
        "w2": lin(ks[3], 256, 128),
        "g2": bn2["g"], "b2": bn2["b"], "m2": bn2["m"], "v2": bn2["v"],
        "w3": lin(ks[4], 128, 64),
        "g3": bn3["g"], "b3": bn3["b"], "m3": bn3["m"], "v3": bn3["v"],
        "w4": lin(ks[8], 64, output_dim),
        "b4": 0.01 * jax.random.normal(ks[9], (1, output_dim), jnp.float32),
    }


if __name__ == "__main__":
    B, C, H, W = 2, 4, 16, 16   # spec_input: NCHW
    T = 64                      # audio_input length
    OUTPUT_DIM = 4

    key = jax.random.PRNGKey(0)
    key_spec, key_aud, key_par = jax.random.split(key, 3)

    spec_input = jax.random.normal(key_spec, (B, C, H, W), jnp.float32)
    audio_input = jax.random.normal(key_aud, (B, T), jnp.float32)
    params = _init_params(key_par, spec_in_dim=C * H, audio_in_dim=T,
                          output_dim=OUTPUT_DIM)

    # one-time offline folding (BN -> weights, frozen projections -> Linear1, lane padding)
    folded = fold_params(params, compute_dtype=jnp.bfloat16)

    logits = heterogeneous_classifier_forward(audio_input, spec_input, folded)
    logits = jax.block_until_ready(logits)

    ref = _reference_forward(audio_input, spec_input, params)
    assert logits.shape == (B, OUTPUT_DIM)
    # bf16 matmul operands + tanh-approx GELU vs f32 exact-erf reference -> loose tolerance
    assert jnp.allclose(logits, ref, atol=5e-2, rtol=5e-2), (logits, ref)

    print("KERNEL_OK")
</pallas_src>

<mosaic_0001>
module attributes {stable_mosaic.version = 11 : i64} {
  func.func @_classifier_kernel(%arg0: i32, %arg1: memref<16x128xbf16, #tpu.memory_space<vmem>>, %arg2: memref<16x128xbf16, #tpu.memory_space<vmem>>, %arg3: memref<128x256xbf16, #tpu.memory_space<vmem>>, %arg4: memref<128x256xbf16, #tpu.memory_space<vmem>>, %arg5: memref<1x256xf32, #tpu.memory_space<vmem>>, %arg6: memref<256x128xbf16, #tpu.memory_space<vmem>>, %arg7: memref<1x128xf32, #tpu.memory_space<vmem>>, %arg8: memref<128x128xbf16, #tpu.memory_space<vmem>>, %arg9: memref<1x128xf32, #tpu.memory_space<vmem>>, %arg10: memref<128x128xbf16, #tpu.memory_space<vmem>>, %arg11: memref<1x128xf32, #tpu.memory_space<vmem>>, %arg12: memref<16x128xf32, #tpu.memory_space<vmem>>) attributes {dimension_semantics = [#tpu.dimension_semantics<parallel>], iteration_bounds = array<i64: 1>, scalar_prefetch = 0 : i64, scratch_operands = 0 : i64, tpu.core_type = #tpu.core_type<tc>, window_params = [{transform_indices = @transform_0, window_bounds = array<i64: 16, 128>}, {transform_indices = @transform_1, window_bounds = array<i64: 16, 128>}, {pipeline_mode = #tpu.pipeline_mode<synchronous>, transform_indices = @transform_2, window_bounds = array<i64: 128, 256>}, {pipeline_mode = #tpu.pipeline_mode<synchronous>, transform_indices = @transform_3, window_bounds = array<i64: 128, 256>}, {pipeline_mode = #tpu.pipeline_mode<synchronous>, transform_indices = @transform_4, window_bounds = array<i64: 1, 256>}, {pipeline_mode = #tpu.pipeline_mode<synchronous>, transform_indices = @transform_5, window_bounds = array<i64: 256, 128>}, {pipeline_mode = #tpu.pipeline_mode<synchronous>, transform_indices = @transform_6, window_bounds = array<i64: 1, 128>}, {pipeline_mode = #tpu.pipeline_mode<synchronous>, transform_indices = @transform_7, window_bounds = array<i64: 128, 128>}, {pipeline_mode = #tpu.pipeline_mode<synchronous>, transform_indices = @transform_8, window_bounds = array<i64: 1, 128>}, {pipeline_mode = #tpu.pipeline_mode<synchronous>, transform_indices = @transform_9, window_bounds = array<i64: 128, 128>}, {pipeline_mode = #tpu.pipeline_mode<synchronous>, transform_indices = @transform_10, window_bounds = array<i64: 1, 128>}, {transform_indices = @transform_11, window_bounds = array<i64: 16, 128>}]} {
    %c0 = arith.constant 0 : index
    %c0_0 = arith.constant 0 : index
    %0 = vector.load %arg1[%c0, %c0_0] : memref<16x128xbf16, #tpu.memory_space<vmem>>, vector<16x128xbf16>
    %c0_1 = arith.constant 0 : index
    %c0_2 = arith.constant 0 : index
    %1 = vector.load %arg3[%c0_1, %c0_2] : memref<128x256xbf16, #tpu.memory_space<vmem>>, vector<128x256xbf16>
    %cst = arith.constant dense<0.000000e+00> : vector<16x256xf32>
    %2 = tpu.matmul %0, %1, %cst {dimension_numbers = #tpu.dot_dimension_numbers<[1], [0], [0], [1], [0, 0, 1, 1], [], []>} : vector<16x128xbf16>, vector<128x256xbf16>, vector<16x256xf32> -> vector<16x256xf32>
    %c0_3 = arith.constant 0 : index
    %c0_4 = arith.constant 0 : index
    %3 = vector.load %arg2[%c0_3, %c0_4] : memref<16x128xbf16, #tpu.memory_space<vmem>>, vector<16x128xbf16>
    %c0_5 = arith.constant 0 : index
    %c0_6 = arith.constant 0 : index
    %4 = vector.load %arg4[%c0_5, %c0_6] : memref<128x256xbf16, #tpu.memory_space<vmem>>, vector<128x256xbf16>
    %cst_7 = arith.constant dense<0.000000e+00> : vector<16x256xf32>
    %5 = tpu.matmul %3, %4, %cst_7 {dimension_numbers = #tpu.dot_dimension_numbers<[1], [0], [0], [1], [0, 0, 1, 1], [], []>} : vector<16x128xbf16>, vector<128x256xbf16>, vector<16x256xf32> -> vector<16x256xf32>
    %6 = arith.addf %2, %5 : vector<16x256xf32>
    %c0_8 = arith.constant 0 : index
    %c0_9 = arith.constant 0 : index
    %7 = vector.load %arg5[%c0_8, %c0_9] : memref<1x256xf32, #tpu.memory_space<vmem>>, vector<1x256xf32>
    %8 = vector.broadcast %7 : vector<1x256xf32> to vector<16x256xf32>
    %9 = arith.addf %6, %8 : vector<16x256xf32>
    %cst_10 = arith.constant 5.000000e-01 : f32
    %10 = vector.broadcast %cst_10 : f32 to vector<16x256xf32>
    %11 = arith.mulf %10, %9 : vector<16x256xf32>
    %cst_11 = arith.constant 4.471500e-02 : f32
    %12 = vector.broadcast %cst_11 : f32 to vector<16x256xf32>
    %13 = arith.mulf %12, %9 : vector<16x256xf32>
    %14 = arith.mulf %13, %9 : vector<16x256xf32>
    %15 = arith.mulf %14, %9 : vector<16x256xf32>
    %16 = arith.addf %9, %15 : vector<16x256xf32>
    %cst_12 = arith.constant 0.797884583 : f32
    %17 = vector.broadcast %cst_12 : f32 to vector<16x256xf32>
    %18 = arith.mulf %17, %16 : vector<16x256xf32>
    %19 = math.tanh %18 : vector<16x256xf32>
    %cst_13 = arith.constant 1.000000e+00 : f32
    %20 = vector.broadcast %cst_13 : f32 to vector<16x256xf32>
    %21 = arith.addf %20, %19 : vector<16x256xf32>
    %22 = arith.mulf %11, %21 : vector<16x256xf32>
    %23 = arith.truncf %22 : vector<16x256xf32> to vector<16x256xbf16>
    %c0_14 = arith.constant 0 : index
    %c0_15 = arith.constant 0 : index
    %24 = vector.load %arg6[%c0_14, %c0_15] : memref<256x128xbf16, #tpu.memory_space<vmem>>, vector<256x128xbf16>
    %cst_16 = arith.constant dense<0.000000e+00> : vector<16x128xf32>
    %25 = tpu.matmul %23, %24, %cst_16 {dimension_numbers = #tpu.dot_dimension_numbers<[1], [0], [0], [1], [0, 0, 1, 1], [], []>} : vector<16x256xbf16>, vector<256x128xbf16>, vector<16x128xf32> -> vector<16x128xf32>
    %c0_17 = arith.constant 0 : index
    %c0_18 = arith.constant 0 : index
    %26 = vector.load %arg7[%c0_17, %c0_18] : memref<1x128xf32, #tpu.memory_space<vmem>>, vector<1x128xf32>
    %27 = vector.broadcast %26 : vector<1x128xf32> to vector<16x128xf32>
    %28 = arith.addf %25, %27 : vector<16x128xf32>
    %cst_19 = arith.constant 5.000000e-01 : f32
    %29 = vector.broadcast %cst_19 : f32 to vector<16x128xf32>
    %30 = arith.mulf %29, %28 : vector<16x128xf32>
    %cst_20 = arith.constant 4.471500e-02 : f32
    %31 = vector.broadcast %cst_20 : f32 to vector<16x128xf32>
    %32 = arith.mulf %31, %28 : vector<16x128xf32>
    %33 = arith.mulf %32, %28 : vector<16x128xf32>
    %34 = arith.mulf %33, %28 : vector<16x128xf32>
    %35 = arith.addf %28, %34 : vector<16x128xf32>
    %cst_21 = arith.constant 0.797884583 : f32
    %36 = vector.broadcast %cst_21 : f32 to vector<16x128xf32>
    %37 = arith.mulf %36, %35 : vector<16x128xf32>
    %38 = math.tanh %37 : vector<16x128xf32>
    %cst_22 = arith.constant 1.000000e+00 : f32
    %39 = vector.broadcast %cst_22 : f32 to vector<16x128xf32>
    %40 = arith.addf %39, %38 : vector<16x128xf32>
    %41 = arith.mulf %30, %40 : vector<16x128xf32>
    %42 = arith.truncf %41 : vector<16x128xf32> to vector<16x128xbf16>
    %c0_23 = arith.constant 0 : index
    %c0_24 = arith.constant 0 : index
    %43 = vector.load %arg8[%c0_23, %c0_24] : memref<128x128xbf16, #tpu.memory_space<vmem>>, vector<128x128xbf16>
    %cst_25 = arith.constant dense<0.000000e+00> : vector<16x128xf32>
    %44 = tpu.matmul %42, %43, %cst_25 {dimension_numbers = #tpu.dot_dimension_numbers<[1], [0], [0], [1], [0, 0, 1, 1], [], []>} : vector<16x128xbf16>, vector<128x128xbf16>, vector<16x128xf32> -> vector<16x128xf32>
    %c0_26 = arith.constant 0 : index
    %c0_27 = arith.constant 0 : index
    %45 = vector.load %arg9[%c0_26, %c0_27] : memref<1x128xf32, #tpu.memory_space<vmem>>, vector<1x128xf32>
    %46 = vector.broadcast %45 : vector<1x128xf32> to vector<16x128xf32>
    %47 = arith.addf %44, %46 : vector<16x128xf32>
    %cst_28 = arith.constant 5.000000e-01 : f32
    %48 = vector.broadcast %cst_28 : f32 to vector<16x128xf32>
    %49 = arith.mulf %48, %47 : vector<16x128xf32>
    %cst_29 = arith.constant 4.471500e-02 : f32
    %50 = vector.broadcast %cst_29 : f32 to vector<16x128xf32>
    %51 = arith.mulf %50, %47 : vector<16x128xf32>
    %52 = arith.mulf %51, %47 : vector<16x128xf32>
    %53 = arith.mulf %52, %47 : vector<16x128xf32>
    %54 = arith.addf %47, %53 : vector<16x128xf32>
    %cst_30 = arith.constant 0.797884583 : f32
    %55 = vector.broadcast %cst_30 : f32 to vector<16x128xf32>
    %56 = arith.mulf %55, %54 : vector<16x128xf32>
    %57 = math.tanh %56 : vector<16x128xf32>
    %cst_31 = arith.constant 1.000000e+00 : f32
    %58 = vector.broadcast %cst_31 : f32 to vector<16x128xf32>
    %59 = arith.addf %58, %57 : vector<16x128xf32>
    %60 = arith.mulf %49, %59 : vector<16x128xf32>
    %61 = arith.truncf %60 : vector<16x128xf32> to vector<16x128xbf16>
    %c0_32 = arith.constant 0 : index
    %c0_33 = arith.constant 0 : index
    %62 = vector.load %arg10[%c0_32, %c0_33] : memref<128x128xbf16, #tpu.memory_space<vmem>>, vector<128x128xbf16>
    %cst_34 = arith.constant dense<0.000000e+00> : vector<16x128xf32>
    %63 = tpu.matmul %61, %62, %cst_34 {dimension_numbers = #tpu.dot_dimension_numbers<[1], [0], [0], [1], [0, 0, 1, 1], [], []>} : vector<16x128xbf16>, vector<128x128xbf16>, vector<16x128xf32> -> vector<16x128xf32>
    %c0_35 = arith.constant 0 : index
    %c0_36 = arith.constant 0 : index
    %64 = vector.load %arg11[%c0_35, %c0_36] : memref<1x128xf32, #tpu.memory_space<vmem>>, vector<1x128xf32>
    %65 = vector.broadcast %64 : vector<1x128xf32> to vector<16x128xf32>
    %66 = arith.addf %63, %65 : vector<16x128xf32>
    %c0_37 = arith.constant 0 : index
    %c0_38 = arith.constant 0 : index
    %67 = vector.load %arg12[%c0_37, %c0_38] : memref<16x128xf32, #tpu.memory_space<vmem>>, vector<16x128xf32>
    tpu.vector_store %arg12[%c0_37, %c0_38], %66 {strides = array<i32>} : memref<16x128xf32, #tpu.memory_space<vmem>>, vector<16x128xf32>,
    return
  }
  func.func @transform_0(%arg0: i32) -> (i32, i32) {
    %c0_i32 = arith.constant 0 : i32
    %c0_i32_0 = arith.constant 0 : i32
    return %arg0, %c0_i32 : i32, i32
  }
  func.func @transform_1(%arg0: i32) -> (i32, i32) {
    %c0_i32 = arith.constant 0 : i32
    %c0_i32_0 = arith.constant 0 : i32
    return %arg0, %c0_i32 : i32, i32
  }
  func.func @transform_2(%arg0: i32) -> (i32, i32) {
    %c0_i32 = arith.constant 0 : i32
    %c0_i32_0 = arith.constant 0 : i32
    %c0_i32_1 = arith.constant 0 : i32
    return %c0_i32, %c0_i32_0 : i32, i32
  }
  func.func @transform_3(%arg0: i32) -> (i32, i32) {
    %c0_i32 = arith.constant 0 : i32
    %c0_i32_0 = arith.constant 0 : i32
    %c0_i32_1 = arith.constant 0 : i32
    return %c0_i32, %c0_i32_0 : i32, i32
  }
  func.func @transform_4(%arg0: i32) -> (i32, i32) {
    %c0_i32 = arith.constant 0 : i32
    %c0_i32_0 = arith.constant 0 : i32
    %c0_i32_1 = arith.constant 0 : i32
    return %c0_i32, %c0_i32_0 : i32, i32
  }
  func.func @transform_5(%arg0: i32) -> (i32, i32) {
    %c0_i32 = arith.constant 0 : i32
    %c0_i32_0 = arith.constant 0 : i32
    %c0_i32_1 = arith.constant 0 : i32
    return %c0_i32, %c0_i32_0 : i32, i32
  }
  func.func @transform_6(%arg0: i32) -> (i32, i32) {
    %c0_i32 = arith.constant 0 : i32
    %c0_i32_0 = arith.constant 0 : i32
    %c0_i32_1 = arith.constant 0 : i32
    return %c0_i32, %c0_i32_0 : i32, i32
  }
  func.func @transform_7(%arg0: i32) -> (i32, i32) {
    %c0_i32 = arith.constant 0 : i32
    %c0_i32_0 = arith.constant 0 : i32
    %c0_i32_1 = arith.constant 0 : i32
    return %c0_i32, %c0_i32_0 : i32, i32
  }
  func.func @transform_8(%arg0: i32) -> (i32, i32) {
    %c0_i32 = arith.constant 0 : i32
    %c0_i32_0 = arith.constant 0 : i32
    %c0_i32_1 = arith.constant 0 : i32
    return %c0_i32, %c0_i32_0 : i32, i32
  }
  func.func @transform_9(%arg0: i32) -> (i32, i32) {
    %c0_i32 = arith.constant 0 : i32
    %c0_i32_0 = arith.constant 0 : i32
    %c0_i32_1 = arith.constant 0 : i32
    return %c0_i32, %c0_i32_0 : i32, i32
  }
  func.func @transform_10(%arg0: i32) -> (i32, i32) {
    %c0_i32 = arith.constant 0 : i32
    %c0_i32_0 = arith.constant 0 : i32
    %c0_i32_1 = arith.constant 0 : i32
    return %c0_i32, %c0_i32_0 : i32, i32
  }
  func.func @transform_11(%arg0: i32) -> (i32, i32) {
    %c0_i32 = arith.constant 0 : i32
    %c0_i32_0 = arith.constant 0 : i32
    return %arg0, %c0_i32 : i32, i32
  }
}

</mosaic_0001>

<llo_original>
// kernel: tpu_custom_call.1
$region0: #{tpu_custom_call.1}
  #allocation0 [shape = 'u32[]', space=smem, size = 0x4, offset = 0x4, fixed_abs, tag = 'smem constant byte address 0x4 - core index']
  #allocation1 [shape = 'u32[144,128]{1,0:T(1,128)}', space=vmem, size = 0x12000, scoped, tag = 'internal scratch']
  %s0 = inlined_call_operand.hbm [shape: bf16[16,128], index: 0, kind: input, shape index: {}]
  %s1 = inlined_call_operand.hbm [shape: bf16[16,128], index: 1, kind: input, shape index: {}]
  %s2 = inlined_call_operand.hbm [shape: bf16[128,256], index: 2, kind: input, shape index: {}]
  %s3 = inlined_call_operand.hbm [shape: bf16[128,256], index: 3, kind: input, shape index: {}]
  %s4 = inlined_call_operand.vmem [shape: f32[1,256], index: 4, kind: input, shape index: {}]
  %s5 = inlined_call_operand.hbm [shape: bf16[256,128], index: 5, kind: input, shape index: {}]
  %s6 = inlined_call_operand.vmem [shape: f32[1,128], index: 6, kind: input, shape index: {}]
  %s7 = inlined_call_operand.hbm [shape: bf16[128,128], index: 7, kind: input, shape index: {}]
  %s8 = inlined_call_operand.vmem [shape: f32[1,128], index: 8, kind: input, shape index: {}]
  %s9 = inlined_call_operand.hbm [shape: bf16[128,128], index: 9, kind: input, shape index: {}]
  %s10 = inlined_call_operand.vmem [shape: f32[1,128], index: 10, kind: input, shape index: {}]
  %s11 = inlined_call_operand.hbm [shape: f32[16,128], index: 11, kind: output, shape index: {}]
  %s12 = sld [smem:[#allocation0]]
  $region82: #{tpu_custom_call.1} parent=0
    _
  %s14 = ssub.s32 1, %s12
  %s15 = scalar_select 0, %s14, %s12
  $region1: #{tpu_custom_call.1} parent=0
    #allocation2 [shape = 'u8[4096]{0}', space=vmem, size = 0x1000, scoped, tag = 'input window, operand 0, single buffered']
    #allocation3 [shape = 's32[1]{0}', space=sflag, size = 0x4, scoped, tag = 'scoped memory for tpu_custom_call.1']
    #allocation4 [shape = 's32[1]{0}', space=sflag, size = 0x4, scoped, tag = 'scoped memory for tpu_custom_call.1']
    #allocation5 [shape = 'u8[4096]{0}', space=vmem, size = 0x1000, scoped, tag = 'input window, operand 1, single buffered']
    #allocation6 [shape = 's32[1]{0}', space=sflag, size = 0x4, scoped, tag = 'scoped memory for tpu_custom_call.1']
    #allocation7 [shape = 'u8[65536]{0}', space=vmem, size = 0x10000, scoped, tag = 'input window, operand 2, single buffered']
    #allocation8 [shape = 'u8[65536]{0}', space=vmem, size = 0x10000, scoped, tag = 'input window, operand 3, single buffered']
    #allocation9 [shape = 's32[1]{0}', space=sflag, size = 0x4, scoped, tag = 'scoped memory for tpu_custom_call.1']
    #allocation10 [shape = 'u8[65536]{0}', space=vmem, size = 0x10000, scoped, tag = 'input window, operand 5, single buffered']
    #allocation11 [shape = 'u8[32768]{0}', space=vmem, size = 0x8000, scoped, tag = 'input window, operand 7, single buffered']
    #allocation12 [shape = 's32[1]{0}', space=sflag, size = 0x4, scoped, tag = 'scoped memory for tpu_custom_call.1']
    #allocation13 [shape = 'u8[32768]{0}', space=vmem, size = 0x8000, scoped, tag = 'input window, operand 9, single buffered']
    #allocation14 [shape = 'u8[8192]{0}', space=vmem, size = 0x2000, scoped, tag = 'output window, operand 0, single buffered']
    %16 = vsyncpa [#allocation3], 0
    %17 = vsyncpa [#allocation6], 0
    %18 = vsyncpa [#allocation9], 0
    %19 = vsyncpa [#allocation12], 0
    %20 = vsyncpa [#allocation4], 0
    // Predicated region
    $region2: #{tpu_custom_call.1} parent=1 // pred_check
      _
    $region3: #{tpu_custom_call.1} parent=1 // pred_check_branch
      %22 = sbr.rel (0) target = $region5
    $region4: #{tpu_custom_call.1} parent=1 // pred_region
      %s24 = ssub.s32 128, 128
      %25 = vsyncadd [#allocation3], %s24
      %s26 = sshll.u32 [#allocation2], 4
      %s27 = int_to_ptr.vmem [resolvable:$true] %s26
      %32 = dma.hbm_to_vmem [thread:$0]  %s0, 128, %s27, [#allocation3], 64, 64, 4
    $region5: #{tpu_custom_call.1} parent=1 // pred_fallthru
      _
    // Predicated region
    $region6: #{tpu_custom_call.1} parent=1 // pred_check
      _
    $region7: #{tpu_custom_call.1} parent=1 // pred_check_branch
      %34 = sbr.rel (0) target = $region9
    $region8: #{tpu_custom_call.1} parent=1 // pred_region
      %s36 = ssub.s32 128, 128
      %37 = vsyncadd [#allocation6], %s36
      %s38 = sshll.u32 [#allocation5], 4
      %s39 = int_to_ptr.vmem [resolvable:$true] %s38
      %44 = dma.hbm_to_vmem [thread:$0]  %s1, 128, %s39, [#allocation6], 64, 64, 4
    $region9: #{tpu_custom_call.1} parent=1 // pred_fallthru
      _
    // Predicated region
    $region10: #{tpu_custom_call.1} parent=1 // pred_check
      _
    $region11: #{tpu_custom_call.1} parent=1 // pred_check_branch
      %46 = sbr.rel (0) target = $region13
    $region12: #{tpu_custom_call.1} parent=1 // pred_region
      %s48 = ssub.s32 2048, 2048
      %49 = vsyncadd [#allocation6], %s48
      %s50 = sshll.u32 [#allocation7], 4
      %s51 = int_to_ptr.vmem [resolvable:$true] %s50
      %56 = dma.hbm_to_vmem [thread:$0]  %s2, 2048, %s51, [#allocation6], 128, 128, 8
    $region13: #{tpu_custom_call.1} parent=1 // pred_fallthru
      _
    // Predicated region
    $region14: #{tpu_custom_call.1} parent=1 // pred_check
      _
    $region15: #{tpu_custom_call.1} parent=1 // pred_check_branch
      %58 = sbr.rel (0) target = $region17
    $region16: #{tpu_custom_call.1} parent=1 // pred_region
      %s60 = ssub.s32 2048, 2048
      %61 = vsyncadd [#allocation9], %s60
      %s62 = sshll.u32 [#allocation8], 4
      %s63 = int_to_ptr.vmem [resolvable:$true] %s62
      %68 = dma.hbm_to_vmem [thread:$0]  %s3, 2048, %s63, [#allocation9], 128, 128, 8
    $region17: #{tpu_custom_call.1} parent=1 // pred_fallthru
      _
    // Predicated region
    $region18: #{tpu_custom_call.1} parent=1 // pred_check
      _
    $region19: #{tpu_custom_call.1} parent=1 // pred_check_branch
      %70 = sbr.rel (0) target = $region21
    $region20: #{tpu_custom_call.1} parent=1 // pred_region
      _
    $region21: #{tpu_custom_call.1} parent=1 // pred_fallthru
      _
    // Predicated region
    $region22: #{tpu_custom_call.1} parent=1 // pred_check
      _
    $region23: #{tpu_custom_call.1} parent=1 // pred_check_branch
      %72 = sbr.rel (0) target = $region25
    $region24: #{tpu_custom_call.1} parent=1 // pred_region
      %s74 = ssub.s32 2048, 2048
      %75 = vsyncadd [#allocation9], %s74
      %s76 = sshll.u32 [#allocation10], 4
      %s77 = int_to_ptr.vmem [resolvable:$true] %s76
      %82 = dma.hbm_to_vmem [thread:$0]  %s5, 2048, %s77, [#allocation9], 64, 64, 4
    $region25: #{tpu_custom_call.1} parent=1 // pred_fallthru
      _
    // Predicated region
    $region26: #{tpu_custom_call.1} parent=1 // pred_check
      _
    $region27: #{tpu_custom_call.1} parent=1 // pred_check_branch
      %84 = sbr.rel (0) target = $region29
    $region28: #{tpu_custom_call.1} parent=1 // pred_region
      _
    $region29: #{tpu_custom_call.1} parent=1 // pred_fallthru
      _
    // Predicated region
    $region30: #{tpu_custom_call.1} parent=1 // pred_check
      _
    $region31: #{tpu_custom_call.1} parent=1 // pred_check_branch
      %86 = sbr.rel (0) target = $region33
    $region32: #{tpu_custom_call.1} parent=1 // pred_region
      %s88 = ssub.s32 1024, 1024
      %89 = vsyncadd [#allocation12], %s88
      %s90 = sshll.u32 [#allocation11], 4
      %s91 = int_to_ptr.vmem [resolvable:$true] %s90
      %96 = dma.hbm_to_vmem [thread:$0]  %s7, 1024, %s91, [#allocation12], 64, 64, 4
    $region33: #{tpu_custom_call.1} parent=1 // pred_fallthru
      _
    // Predicated region
    $region34: #{tpu_custom_call.1} parent=1 // pred_check
      _
    $region35: #{tpu_custom_call.1} parent=1 // pred_check_branch
      %98 = sbr.rel (0) target = $region37
    $region36: #{tpu_custom_call.1} parent=1 // pred_region
      _
    $region37: #{tpu_custom_call.1} parent=1 // pred_fallthru
      _
    // Predicated region
    $region38: #{tpu_custom_call.1} parent=1 // pred_check
      _
    $region39: #{tpu_custom_call.1} parent=1 // pred_check_branch
      %100 = sbr.rel (0) target = $region41
    $region40: #{tpu_custom_call.1} parent=1 // pred_region
      %s102 = ssub.s32 1024, 1024
      %103 = vsyncadd [#allocation12], %s102
      %s104 = sshll.u32 [#allocation13], 4
      %s105 = int_to_ptr.vmem [resolvable:$true] %s104
      %110 = dma.hbm_to_vmem [thread:$0]  %s9, 1024, %s105, [#allocation12], 64, 64, 4
    $region41: #{tpu_custom_call.1} parent=1 // pred_fallthru
      _
    // Predicated region
    $region42: #{tpu_custom_call.1} parent=1 // pred_check
      _
    $region43: #{tpu_custom_call.1} parent=1 // pred_check_branch
      %112 = sbr.rel (0) target = $region45
    $region44: #{tpu_custom_call.1} parent=1 // pred_region
      _
    $region45: #{tpu_custom_call.1} parent=1 // pred_fallthru
      _
    // Predicated region
    $region46: #{tpu_custom_call.1} parent=1 // pred_check
      _
    $region47: #{tpu_custom_call.1} parent=1 // pred_check_branch
      %114 = sbr.rel (0) target = $region49
    $region48: #{tpu_custom_call.1} parent=1 // pred_region
      %115 = dma.done [#allocation3], 128
    $region49: #{tpu_custom_call.1} parent=1 // pred_fallthru
      _
    // Predicated region
    $region50: #{tpu_custom_call.1} parent=1 // pred_check
      _
    $region51: #{tpu_custom_call.1} parent=1 // pred_check_branch
      %117 = sbr.rel (0) target = $region53
    $region52: #{tpu_custom_call.1} parent=1 // pred_region
      %118 = dma.done [#allocation6], 128
    $region53: #{tpu_custom_call.1} parent=1 // pred_fallthru
      _
    // Predicated region
    $region54: #{tpu_custom_call.1} parent=1 // pred_check
      _
    $region55: #{tpu_custom_call.1} parent=1 // pred_check_branch
      %120 = sbr.rel (0) target = $region57
    $region56: #{tpu_custom_call.1} parent=1 // pred_region
      %121 = dma.done [#allocation6], 2048
    $region57: #{tpu_custom_call.1} parent=1 // pred_fallthru
      _
    // Predicated region
    $region58: #{tpu_custom_call.1} parent=1 // pred_check
      _
    $region59: #{tpu_custom_call.1} parent=1 // pred_check_branch
      %123 = sbr.rel (0) target = $region61
    $region60: #{tpu_custom_call.1} parent=1 // pred_region
      %124 = dma.done [#allocation9], 2048
    $region61: #{tpu_custom_call.1} parent=1 // pred_fallthru
      _
    // Predicated region
    $region62: #{tpu_custom_call.1} parent=1 // pred_check
      _
    $region63: #{tpu_custom_call.1} parent=1 // pred_check_branch
      %126 = sbr.rel (0) target = $region65
    $region64: #{tpu_custom_call.1} parent=1 // pred_region
      %127 = dma.done [#allocation9], 2048
    $region65: #{tpu_custom_call.1} parent=1 // pred_fallthru
      _
    // Predicated region
    $region66: #{tpu_custom_call.1} parent=1 // pred_check
      _
    $region67: #{tpu_custom_call.1} parent=1 // pred_check_branch
      %129 = sbr.rel (0) target = $region69
    $region68: #{tpu_custom_call.1} parent=1 // pred_region
      %130 = dma.done [#allocation12], 1024
    $region69: #{tpu_custom_call.1} parent=1 // pred_fallthru
      _
    // Predicated region
    $region70: #{tpu_custom_call.1} parent=1 // pred_check
      _
    $region71: #{tpu_custom_call.1} parent=1 // pred_check_branch
      %132 = sbr.rel (0) target = $region73
    $region72: #{tpu_custom_call.1} parent=1 // pred_region
      %133 = dma.done [#allocation12], 1024
    $region73: #{tpu_custom_call.1} parent=1 // pred_fallthru
      _
    %v135 = vld [vmem:[#allocation2] sm:$0xf]
    %v136 = vld [vmem:[#allocation2 + $0x4] sm:$0xf]
    %v137 = vld [vmem:[#allocation7] sm:$0xff]
    %v138 = vld [vmem:[#allocation7 + $0x8] sm:$0xff]
    %v139 = vld [vmem:[#allocation7 + $0x10] sm:$0xff]
    %v140 = vld [vmem:[#allocation7 + $0x18] sm:$0xff]
    %v141 = vld [vmem:[#allocation7 + $0x20] sm:$0xff]
    %v142 = vld [vmem:[#allocation7 + $0x28] sm:$0xff]
    %v143 = vld [vmem:[#allocation7 + $0x30] sm:$0xff]
    %v144 = vld [vmem:[#allocation7 + $0x38] sm:$0xff]
    %v145 = vld [vmem:[#allocation7 + $0x40] sm:$0xff]
    %v146 = vld [vmem:[#allocation7 + $0x48] sm:$0xff]
    %v147 = vld [vmem:[#allocation7 + $0x50] sm:$0xff]
    %v148 = vld [vmem:[#allocation7 + $0x58] sm:$0xff]
    %v149 = vld [vmem:[#allocation7 + $0x60] sm:$0xff]
    %v150 = vld [vmem:[#allocation7 + $0x68] sm:$0xff]
    %v151 = vld [vmem:[#allocation7 + $0x70] sm:$0xff]
    %v152 = vld [vmem:[#allocation7 + $0x78] sm:$0xff]
    %v153 = vld [vmem:[#allocation5] sm:$0xf]
    %v154 = vld [vmem:[#allocation5 + $0x4] sm:$0xf]
    %v155 = vld [vmem:[#allocation8] sm:$0xff]
    %v156 = vld [vmem:[#allocation8 + $0x8] sm:$0xff]
    %v157 = vld [vmem:[#allocation8 + $0x10] sm:$0xff]
    %v158 = vld [vmem:[#allocation8 + $0x18] sm:$0xff]
    %v159 = vld [vmem:[#allocation8 + $0x20] sm:$0xff]
    %v160 = vld [vmem:[#allocation8 + $0x28] sm:$0xff]
    %v161 = vld [vmem:[#allocation8 + $0x30] sm:$0xff]
    %v162 = vld [vmem:[#allocation8 + $0x38] sm:$0xff]
    %v163 = vld [vmem:[#allocation8 + $0x40] sm:$0xff]
    %v164 = vld [vmem:[#allocation8 + $0x48] sm:$0xff]
    %v165 = vld [vmem:[#allocation8 + $0x50] sm:$0xff]
    %v166 = vld [vmem:[#allocation8 + $0x58] sm:$0xff]
    %v167 = vld [vmem:[#allocation8 + $0x60] sm:$0xff]
    %v168 = vld [vmem:[#allocation8 + $0x68] sm:$0xff]
    %v169 = vld [vmem:[#allocation8 + $0x70] sm:$0xff]
    %v170 = vld [vmem:[#allocation8 + $0x78] sm:$0xff]
    %v173 = vunpack.c.l.b16 %v153
    %v174 = vunpack.c.l.b16 %v154
    %v175 = vpack.c.b16 %v174, %v173
    %v193 = vunpack.c.l.b16 %v155
    %v194 = vunpack.c.h.b16 %v155
    %v195 = vunpack.c.l.b16 %v156
    %v196 = vunpack.c.h.b16 %v156
    %v197 = vunpack.c.l.b16 %v157
    %v198 = vunpack.c.h.b16 %v157
    %v199 = vunpack.c.l.b16 %v158
    %v200 = vunpack.c.h.b16 %v158
    %v201 = vunpack.c.l.b16 %v159
    %v202 = vunpack.c.h.b16 %v159
    %v203 = vunpack.c.l.b16 %v160
    %v204 = vunpack.c.h.b16 %v160
    %v205 = vunpack.c.l.b16 %v161
    %v206 = vunpack.c.h.b16 %v161
    %v207 = vunpack.c.l.b16 %v162
    %v208 = vunpack.c.h.b16 %v162
    %v209 = vunpack.c.l.b16 %v163
    %v210 = vunpack.c.h.b16 %v163
    %v211 = vunpack.c.l.b16 %v164
    %v212 = vunpack.c.h.b16 %v164
    %v213 = vunpack.c.l.b16 %v165
    %v214 = vunpack.c.h.b16 %v165
    %v215 = vunpack.c.l.b16 %v166
    %v216 = vunpack.c.h.b16 %v166
    %v217 = vunpack.c.l.b16 %v167
    %v218 = vunpack.c.h.b16 %v167
    %v219 = vunpack.c.l.b16 %v168
    %v220 = vunpack.c.h.b16 %v168
    %v221 = vunpack.c.l.b16 %v169
    %v222 = vunpack.c.h.b16 %v169
    %v223 = vunpack.c.l.b16 %v170
    %v224 = vunpack.c.h.b16 %v170
    %v225 = vpack.c.b16 %v195, %v193
    %v226 = vpack.c.b16 %v196, %v194
    %v227 = vpack.c.b16 %v199, %v197
    %v228 = vpack.c.b16 %v200, %v198
    %v229 = vpack.c.b16 %v203, %v201
    %v230 = vpack.c.b16 %v204, %v202
    %v231 = vpack.c.b16 %v207, %v205
    %v232 = vpack.c.b16 %v208, %v206
    %v233 = vpack.c.b16 %v211, %v209
    %v234 = vpack.c.b16 %v212, %v210
    %v235 = vpack.c.b16 %v215, %v213
    %v236 = vpack.c.b16 %v216, %v214
    %v237 = vpack.c.b16 %v219, %v217
    %v238 = vpack.c.b16 %v220, %v218
    %v239 = vpack.c.b16 %v223, %v221
    %v240 = vpack.c.b16 %v224, %v222
    %257 = vmatprep.subr.bf16.mxu0 %v240
    %258 = vmatpush1.bf16.msra.mxu0 %v239
    %259 = vmatprep.subr.bf16.mxu0 %v238
    %260 = vmatpush1.bf16.msra.mxu0 %v237
    %261 = vmatprep.subr.bf16.mxu0 %v236
    %262 = vmatpush1.bf16.msra.mxu0 %v235
    %263 = vmatprep.subr.bf16.mxu0 %v234
    %264 = vmatpush1.bf16.msra.mxu0 %v233
    %265 = vmatprep.subr.bf16.mxu0 %v232
    %266 = vmatpush1.bf16.msra.mxu0 %v231
    %267 = vmatprep.subr.bf16.mxu0 %v230
    %268 = vmatpush1.bf16.msra.mxu0 %v229
    %269 = vmatprep.subr.bf16.mxu0 %v228
    %270 = vmatpush1.bf16.msra.mxu0 %v227
    %271 = vmatprep.subr.bf16.mxu0 %v226
    %272 = vmatpush1.bf16.msra.mxu0 %v225
    %273 = vmatprep.subr.bf16.mxu0 0
    %274 = vmatpush2.bf16.msra.mxu0 0
    %275 = vmatprep.subr.bf16.mxu0 0
    %276 = vmatpush2.bf16.msra.mxu0 0
    %277 = vmatprep.subr.bf16.mxu0 0
    %278 = vmatpush2.bf16.msra.mxu0 0
    %279 = vmatprep.subr.bf16.mxu0 0
    %280 = vmatpush2.bf16.msra.mxu0 0
    %281 = vmatprep.subr.bf16.mxu0 0
    %282 = vmatpush2.bf16.msra.mxu0 0
    %283 = vmatprep.subr.bf16.mxu0 0
    %284 = vmatpush2.bf16.msra.mxu0 0
    %285 = vmatprep.subr.bf16.mxu0 0
    %286 = vmatpush2.bf16.msra.mxu0 0
    %287 = vmatprep.subr.bf16.mxu0 0
    %288 = vmatpush2.bf16.msra.mxu0 0
    %289 = vmatprep.mubr.bf16.mxu0 0
    %290 = vmatmul.mubr.bf16.gmra.mxu0 %v175
    %v291 = vpop.f32.mrf.mxu0
    %v292 = vadd.f32 0.0, %v291
    %v293 = vpop.f32.mrf.mxu0
    %v294 = vadd.f32 0.0, %v293
    %v295 = vpop.f32.mrf.mxu0
    %v296 = vadd.f32 0.0, %v295
    %v297 = vpop.f32.mrf.mxu0
    %v298 = vadd.f32 0.0, %v297
    %299 = vdwg.mxu0
    %v302 = vunpack.c.l.b16 %v135
    %v303 = vunpack.c.l.b16 %v136
    %v304 = vpack.c.b16 %v303, %v302
    %v322 = vunpack.c.l.b16 %v137
    %v323 = vunpack.c.h.b16 %v137
    %v324 = vunpack.c.l.b16 %v138
    %v325 = vunpack.c.h.b16 %v138
    %v326 = vunpack.c.l.b16 %v139
    %v327 = vunpack.c.h.b16 %v139
    %v328 = vunpack.c.l.b16 %v140
    %v329 = vunpack.c.h.b16 %v140
    %v330 = vunpack.c.l.b16 %v141
    %v331 = vunpack.c.h.b16 %v141
    %v332 = vunpack.c.l.b16 %v142
    %v333 = vunpack.c.h.b16 %v142
    %v334 = vunpack.c.l.b16 %v143
    %v335 = vunpack.c.h.b16 %v143
    %v336 = vunpack.c.l.b16 %v144
    %v337 = vunpack.c.h.b16 %v144
    %v338 = vunpack.c.l.b16 %v145
    %v339 = vunpack.c.h.b16 %v145
    %v340 = vunpack.c.l.b16 %v146
    %v341 = vunpack.c.h.b16 %v146
    %v342 = vunpack.c.l.b16 %v147
    %v343 = vunpack.c.h.b16 %v147
    %v344 = vunpack.c.l.b16 %v148
    %v345 = vunpack.c.h.b16 %v148
    %v346 = vunpack.c.l.b16 %v149
    %v347 = vunpack.c.h.b16 %v149
    %v348 = vunpack.c.l.b16 %v150
    %v349 = vunpack.c.h.b16 %v150
    %v350 = vunpack.c.l.b16 %v151
    %v351 = vunpack.c.h.b16 %v151
    %v352 = vunpack.c.l.b16 %v152
    %v353 = vunpack.c.h.b16 %v152
    %v354 = vpack.c.b16 %v324, %v322
    %v355 = vpack.c.b16 %v325, %v323
    %v356 = vpack.c.b16 %v328, %v326
    %v357 = vpack.c.b16 %v329, %v327
    %v358 = vpack.c.b16 %v332, %v330
    %v359 = vpack.c.b16 %v333, %v331
    %v360 = vpack.c.b16 %v336, %v334
    %v361 = vpack.c.b16 %v337, %v335
    %v362 = vpack.c.b16 %v340, %v338
    %v363 = vpack.c.b16 %v341, %v339
    %v364 = vpack.c.b16 %v344, %v342
    %v365 = vpack.c.b16 %v345, %v343
    %v366 = vpack.c.b16 %v348, %v346
    %v367 = vpack.c.b16 %v349, %v347
    %v368 = vpack.c.b16 %v352, %v350
    %v369 = vpack.c.b16 %v353, %v351
    %386 = vmatprep.subr.bf16.mxu0 %v369
    %387 = vmatpush1.bf16.msra.mxu0 %v368
    %388 = vmatprep.subr.bf16.mxu0 %v367
    %389 = vmatpush1.bf16.msra.mxu0 %v366
    %390 = vmatprep.subr.bf16.mxu0 %v365
    %391 = vmatpush1.bf16.msra.mxu0 %v364
    %392 = vmatprep.subr.bf16.mxu0 %v363
    %393 = vmatpush1.bf16.msra.mxu0 %v362
    %394 = vmatprep.subr.bf16.mxu0 %v361
    %395 = vmatpush1.bf16.msra.mxu0 %v360
    %396 = vmatprep.subr.bf16.mxu0 %v359
    %397 = vmatpush1.bf16.msra.mxu0 %v358
    %398 = vmatprep.subr.bf16.mxu0 %v357
    %399 = vmatpush1.bf16.msra.mxu0 %v356
    %400 = vmatprep.subr.bf16.mxu0 %v355
    %401 = vmatpush1.bf16.msra.mxu0 %v354
    %402 = vmatprep.subr.bf16.mxu0 0
    %403 = vmatpush2.bf16.msra.mxu0 0
    %404 = vmatprep.subr.bf16.mxu0 0
    %405 = vmatpush2.bf16.msra.mxu0 0
    %406 = vmatprep.subr.bf16.mxu0 0
    %407 = vmatpush2.bf16.msra.mxu0 0
    %408 = vmatprep.subr.bf16.mxu0 0
    %409 = vmatpush2.bf16.msra.mxu0 0
    %410 = vmatprep.subr.bf16.mxu0 0
    %411 = vmatpush2.bf16.msra.mxu0 0
    %412 = vmatprep.subr.bf16.mxu0 0
    %413 = vmatpush2.bf16.msra.mxu0 0
    %414 = vmatprep.subr.bf16.mxu0 0
    %415 = vmatpush2.bf16.msra.mxu0 0
    %416 = vmatprep.subr.bf16.mxu0 0
    %417 = vmatpush2.bf16.msra.mxu0 0
    %418 = vmatprep.mubr.bf16.mxu0 0
    %419 = vmatmul.mubr.bf16.gmra.mxu0 %v304
    %v420 = vpop.f32.mrf.mxu0
    %v421 = vadd.f32 %v292, %v420
    %v422 = vpop.f32.mrf.mxu0
    %v423 = vadd.f32 %v294, %v422
    %v424 = vpop.f32.mrf.mxu0
    %v425 = vadd.f32 %v296, %v424
    %v426 = vpop.f32.mrf.mxu0
    %v427 = vadd.f32 %v298, %v426
    %428 = vdwg.mxu0
    %v429 = vld [vmem:[%s4] sm:$0x3]
    %v431 = vlaneseq
    %v432 = vshrl.u32 %v431, 7
    %v433 = vsub.s32 0, %v432
    %v434 = vrot.slane %v429, %v433
    %v435 = vlaneseq
    %v436 = vshrl.u32 %v435, 7
    %v437 = vsub.s32 1, %v436
    %v438 = vrot.slane %v429, %v437
    %v441 = vadd.f32 %v421, %v434
    %v442 = vadd.f32 %v423, %v438
    %v443 = vadd.f32 %v425, %v434
    %v444 = vadd.f32 %v427, %v438
    %v445 = vmul.f32 %v441, 0.5
    %v446 = vmul.f32 %v442, 0.5
    %v447 = vmul.f32 %v443, 0.5
    %v448 = vmul.f32 %v444, 0.5
    %v449 = vmul.f32 %v441, 0.044715
    %v450 = vmul.f32 %v442, 0.044715
    %v451 = vmul.f32 %v443, 0.044715
    %v452 = vmul.f32 %v444, 0.044715
    %v453 = vmul.f32 %v449, %v441
    %v454 = vmul.f32 %v450, %v442
    %v455 = vmul.f32 %v451, %v443
    %v456 = vmul.f32 %v452, %v444
    %v457 = vmul.f32 %v453, %v441
    %v458 = vmul.f32 %v454, %v442
    %v459 = vmul.f32 %v455, %v443
    %v460 = vmul.f32 %v456, %v444
    %v461 = vadd.f32 %v441, %v457
    %v462 = vadd.f32 %v442, %v458
    %v463 = vadd.f32 %v443, %v459
    %v464 = vadd.f32 %v444, %v460
    %v465 = vmul.f32 %v461, 0.7978846
    %v466 = vmul.f32 %v462, 0.7978846
    %v467 = vmul.f32 %v463, 0.7978846
    %v468 = vmul.f32 %v464, 0.7978846
    %v469 = vtanh.pop %v465
    %v470 = vtanh.pop %v466
    %v471 = vtanh.pop %v467
    %v472 = vtanh.pop %v468
    %v473 = vadd.f32 %v469, 1.0
    %v474 = vadd.f32 %v470, 1.0
    %v475 = vadd.f32 %v471, 1.0
    %v476 = vadd.f32 %v472, 1.0
    %v477 = vmul.f32 %v445, %v473
    %v478 = vmul.f32 %v446, %v474
    %v479 = vmul.f32 %v447, %v475
    %v480 = vmul.f32 %v448, %v476
    %v481 = vpack.c.bf16 %v479, %v477
    %v482 = vpack.c.bf16 %v480, %v478
    %v483 = vld [vmem:[#allocation10] sm:$0xf]
    %v484 = vld [vmem:[#allocation10 + $0x4] sm:$0xf]
    %v485 = vld [vmem:[#allocation10 + $0x8] sm:$0xf]
    %v486 = vld [vmem:[#allocation10 + $0xc] sm:$0xf]
    %v487 = vld [vmem:[#allocation10 + $0x10] sm:$0xf]
    %v488 = vld [vmem:[#allocation10 + $0x14] sm:$0xf]
    %v489 = vld [vmem:[#allocation10 + $0x18] sm:$0xf]
    %v490 = vld [vmem:[#allocation10 + $0x1c] sm:$0xf]
    %v491 = vld [vmem:[#allocation10 + $0x20] sm:$0xf]
    %v492 = vld [vmem:[#allocation10 + $0x24] sm:$0xf]
    %v493 = vld [vmem:[#allocation10 + $0x28] sm:$0xf]
    %v494 = vld [vmem:[#allocation10 + $0x2c] sm:$0xf]
    %v495 = vld [vmem:[#allocation10 + $0x30] sm:$0xf]
    %v496 = vld [vmem:[#allocation10 + $0x34] sm:$0xf]
    %v497 = vld [vmem:[#allocation10 + $0x38] sm:$0xf]
    %v498 = vld [vmem:[#allocation10 + $0x3c] sm:$0xf]
    %v499 = vld [vmem:[#allocation10 + $0x40] sm:$0xf]
    %v500 = vld [vmem:[#allocation10 + $0x44] sm:$0xf]
    %v501 = vld [vmem:[#allocation10 + $0x48] sm:$0xf]
    %v502 = vld [vmem:[#allocation10 + $0x4c] sm:$0xf]
    %v503 = vld [vmem:[#allocation10 + $0x50] sm:$0xf]
    %v504 = vld [vmem:[#allocation10 + $0x54] sm:$0xf]
    %v505 = vld [vmem:[#allocation10 + $0x58] sm:$0xf]
    %v506 = vld [vmem:[#allocation10 + $0x5c] sm:$0xf]
    %v507 = vld [vmem:[#allocation10 + $0x60] sm:$0xf]
    %v508 = vld [vmem:[#allocation10 + $0x64] sm:$0xf]
    %v509 = vld [vmem:[#allocation10 + $0x68] sm:$0xf]
    %v510 = vld [vmem:[#allocation10 + $0x6c] sm:$0xf]
    %v511 = vld [vmem:[#allocation10 + $0x70] sm:$0xf]
    %v512 = vld [vmem:[#allocation10 + $0x74] sm:$0xf]
    %v513 = vld [vmem:[#allocation10 + $0x78] sm:$0xf]
    %v514 = vld [vmem:[#allocation10 + $0x7c] sm:$0xf]
    %v515 = vld [vmem:[%s6] sm:$0x1]
    %v517 = vlaneseq
    %v518 = vshrl.u32 %v517, 7
    %v519 = vsub.s32 0, %v518
    %v520 = vrot.slane %v515, %v519
    %v554 = vunpack.c.l.b16 %v483
    %v555 = vunpack.c.l.b16 %v484
    %v556 = vunpack.c.l.b16 %v485
    %v557 = vunpack.c.l.b16 %v486
    %v558 = vunpack.c.l.b16 %v487
    %v559 = vunpack.c.l.b16 %v488
    %v560 = vunpack.c.l.b16 %v489
    %v561 = vunpack.c.l.b16 %v490
    %v562 = vunpack.c.l.b16 %v491
    %v563 = vunpack.c.l.b16 %v492
    %v564 = vunpack.c.l.b16 %v493
    %v565 = vunpack.c.l.b16 %v494
    %v566 = vunpack.c.l.b16 %v495
    %v567 = vunpack.c.l.b16 %v496
    %v568 = vunpack.c.l.b16 %v497
    %v569 = vunpack.c.l.b16 %v498
    %v570 = vunpack.c.l.b16 %v499
    %v571 = vunpack.c.l.b16 %v500
    %v572 = vunpack.c.l.b16 %v501
    %v573 = vunpack.c.l.b16 %v502
    %v574 = vunpack.c.l.b16 %v503
    %v575 = vunpack.c.l.b16 %v504
    %v576 = vunpack.c.l.b16 %v505
    %v577 = vunpack.c.l.b16 %v506
    %v578 = vunpack.c.l.b16 %v507
    %v579 = vunpack.c.l.b16 %v508
    %v580 = vunpack.c.l.b16 %v509
    %v581 = vunpack.c.l.b16 %v510
    %v582 = vunpack.c.l.b16 %v511
    %v583 = vunpack.c.l.b16 %v512
    %v584 = vunpack.c.l.b16 %v513
    %v585 = vunpack.c.l.b16 %v514
    %v586 = vpack.c.b16 %v555, %v554
    %v587 = vpack.c.b16 %v557, %v556
    %v588 = vpack.c.b16 %v559, %v558
    %v589 = vpack.c.b16 %v561, %v560
    %v590 = vpack.c.b16 %v563, %v562
    %v591 = vpack.c.b16 %v565, %v564
    %v592 = vpack.c.b16 %v567, %v566
    %v593 = vpack.c.b16 %v569, %v568
    %v594 = vpack.c.b16 %v571, %v570
    %v595 = vpack.c.b16 %v573, %v572
    %v596 = vpack.c.b16 %v575, %v574
    %v597 = vpack.c.b16 %v577, %v576
    %v598 = vpack.c.b16 %v579, %v578
    %v599 = vpack.c.b16 %v581, %v580
    %v600 = vpack.c.b16 %v583, %v582
    %v601 = vpack.c.b16 %v585, %v584
    %618 = vmatprep.subr.bf16.mxu0 0
    %619 = vmatpush1.bf16.msra.mxu0 %v593
    %620 = vmatprep.subr.bf16.mxu0 0
    %621 = vmatpush1.bf16.msra.mxu0 %v592
    %622 = vmatprep.subr.bf16.mxu0 0
    %623 = vmatpush1.bf16.msra.mxu0 %v591
    %624 = vmatprep.subr.bf16.mxu0 0
    %625 = vmatpush1.bf16.msra.mxu0 %v590
    %626 = vmatprep.subr.bf16.mxu0 0
    %627 = vmatpush1.bf16.msra.mxu0 %v589
    %628 = vmatprep.subr.bf16.mxu0 0
    %629 = vmatpush1.bf16.msra.mxu0 %v588
    %630 = vmatprep.subr.bf16.mxu0 0
    %631 = vmatpush1.bf16.msra.mxu0 %v587
    %632 = vmatprep.subr.bf16.mxu0 0
    %633 = vmatpush1.bf16.msra.mxu0 %v586
    %634 = vmatprep.subr.bf16.mxu0 0
    %635 = vmatpush2.bf16.msra.mxu0 %v601
    %636 = vmatprep.subr.bf16.mxu0 0
    %637 = vmatpush2.bf16.msra.mxu0 %v600
    %638 = vmatprep.subr.bf16.mxu0 0
    %639 = vmatpush2.bf16.msra.mxu0 %v599
    %640 = vmatprep.subr.bf16.mxu0 0
    %641 = vmatpush2.bf16.msra.mxu0 %v598
    %642 = vmatprep.subr.bf16.mxu0 0
    %643 = vmatpush2.bf16.msra.mxu0 %v597
    %644 = vmatprep.subr.bf16.mxu0 0
    %645 = vmatpush2.bf16.msra.mxu0 %v596
    %646 = vmatprep.subr.bf16.mxu0 0
    %647 = vmatpush2.bf16.msra.mxu0 %v595
    %648 = vmatprep.subr.bf16.mxu0 0
    %649 = vmatpush2.bf16.msra.mxu0 %v594
    %650 = vmatprep.mubr.bf16.mxu0 %v482
    %651 = vmatmul.mubr.bf16.gmra.mxu0 %v481
    %v652 = vpop.f32.mrf.mxu0
    %v653 = vadd.f32 %v520, %v652
    %v654 = vpop.f32.mrf.mxu0
    %v655 = vpop.f32.mrf.mxu0
    %v656 = vadd.f32 %v520, %v655
    %v657 = vpop.f32.mrf.mxu0
    %658 = vdwg.mxu0
    %v659 = vmul.f32 %v653, 0.5
    %v660 = vmul.f32 %v656, 0.5
    %v661 = vmul.f32 %v653, 0.044715
    %v662 = vmul.f32 %v656, 0.044715
    %v663 = vmul.f32 %v661, %v653
    %v664 = vmul.f32 %v662, %v656
    %v665 = vmul.f32 %v663, %v653
    %v666 = vmul.f32 %v664, %v656
    %v667 = vadd.f32 %v653, %v665
    %v668 = vadd.f32 %v656, %v666
    %v669 = vmul.f32 %v667, 0.7978846
    %v670 = vmul.f32 %v668, 0.7978846
    %v671 = vtanh.pop %v669
    %v672 = vtanh.pop %v670
    %v673 = vadd.f32 %v671, 1.0
    %v674 = vadd.f32 %v672, 1.0
    %v675 = vmul.f32 %v659, %v673
    %v676 = vmul.f32 %v660, %v674
    %v677 = vpack.c.bf16 %v676, %v675
    %v678 = vld [vmem:[#allocation11] sm:$0xf]
    %v679 = vld [vmem:[#allocation11 + $0x4] sm:$0xf]
    %v680 = vld [vmem:[#allocation11 + $0x8] sm:$0xf]
    %v681 = vld [vmem:[#allocation11 + $0xc] sm:$0xf]
    %v682 = vld [vmem:[#allocation11 + $0x10] sm:$0xf]
    %v683 = vld [vmem:[#allocation11 + $0x14] sm:$0xf]
    %v684 = vld [vmem:[#allocation11 + $0x18] sm:$0xf]
    %v685 = vld [vmem:[#allocation11 + $0x1c] sm:$0xf]
    %v686 = vld [vmem:[#allocation11 + $0x20] sm:$0xf]
    %v687 = vld [vmem:[#allocation11 + $0x24] sm:$0xf]
    %v688 = vld [vmem:[#allocation11 + $0x28] sm:$0xf]
    %v689 = vld [vmem:[#allocation11 + $0x2c] sm:$0xf]
    %v690 = vld [vmem:[#allocation11 + $0x30] sm:$0xf]
    %v691 = vld [vmem:[#allocation11 + $0x34] sm:$0xf]
    %v692 = vld [vmem:[#allocation11 + $0x38] sm:$0xf]
    %v693 = vld [vmem:[#allocation11 + $0x3c] sm:$0xf]
    %v694 = vld [vmem:[%s8] sm:$0x1]
    %v696 = vlaneseq
    %v697 = vshrl.u32 %v696, 7
    %v698 = vsub.s32 0, %v697
    %v699 = vrot.slane %v694, %v698
    %v717 = vunpack.c.l.b16 %v678
    %v718 = vunpack.c.l.b16 %v679
    %v719 = vunpack.c.l.b16 %v680
    %v720 = vunpack.c.l.b16 %v681
    %v721 = vunpack.c.l.b16 %v682
    %v722 = vunpack.c.l.b16 %v683
    %v723 = vunpack.c.l.b16 %v684
    %v724 = vunpack.c.l.b16 %v685
    %v725 = vunpack.c.l.b16 %v686
    %v726 = vunpack.c.l.b16 %v687
    %v727 = vunpack.c.l.b16 %v688
    %v728 = vunpack.c.l.b16 %v689
    %v729 = vunpack.c.l.b16 %v690
    %v730 = vunpack.c.l.b16 %v691
    %v731 = vunpack.c.l.b16 %v692
    %v732 = vunpack.c.l.b16 %v693
    %v733 = vpack.c.b16 %v718, %v717
    %v734 = vpack.c.b16 %v720, %v719
    %v735 = vpack.c.b16 %v722, %v721
    %v736 = vpack.c.b16 %v724, %v723
    %v737 = vpack.c.b16 %v726, %v725
    %v738 = vpack.c.b16 %v728, %v727
    %v739 = vpack.c.b16 %v730, %v729
    %v740 = vpack.c.b16 %v732, %v731
    %749 = vmatprep.subr.bf16.mxu0 0
    %750 = vmatpush1.bf16.msra.mxu0 %v740
    %751 = vmatprep.subr.bf16.mxu0 0
    %752 = vmatpush1.bf16.msra.mxu0 %v739
    %753 = vmatprep.subr.bf16.mxu0 0
    %754 = vmatpush1.bf16.msra.mxu0 %v738
    %755 = vmatprep.subr.bf16.mxu0 0
    %756 = vmatpush1.bf16.msra.mxu0 %v737
    %757 = vmatprep.subr.bf16.mxu0 0
    %758 = vmatpush1.bf16.msra.mxu0 %v736
    %759 = vmatprep.subr.bf16.mxu0 0
    %760 = vmatpush1.bf16.msra.mxu0 %v735
    %761 = vmatprep.subr.bf16.mxu0 0
    %762 = vmatpush1.bf16.msra.mxu0 %v734
    %763 = vmatprep.subr.bf16.mxu0 0
    %764 = vmatpush1.bf16.msra.mxu0 %v733
    %765 = vmatprep.subr.bf16.mxu0 0
    %766 = vmatpush2.bf16.msra.mxu0 0
    %767 = vmatprep.subr.bf16.mxu0 0
    %768 = vmatpush2.bf16.msra.mxu0 0
    %769 = vmatprep.subr.bf16.mxu0 0
    %770 = vmatpush2.bf16.msra.mxu0 0
    %771 = vmatprep.subr.bf16.mxu0 0
    %772 = vmatpush2.bf16.msra.mxu0 0
    %773 = vmatprep.subr.bf16.mxu0 0
    %774 = vmatpush2.bf16.msra.mxu0 0
    %775 = vmatprep.subr.bf16.mxu0 0
    %776 = vmatpush2.bf16.msra.mxu0 0
    %777 = vmatprep.subr.bf16.mxu0 0
    %778 = vmatpush2.bf16.msra.mxu0 0
    %779 = vmatprep.subr.bf16.mxu0 0
    %780 = vmatpush2.bf16.msra.mxu0 0
    %781 = vmatprep.mubr.bf16.mxu0 0
    %782 = vmatmul.mubr.bf16.gmra.mxu0 %v677
    %v783 = vpop.f32.mrf.mxu0
    %v784 = vadd.f32 %v699, %v783
    %v785 = vpop.f32.mrf.mxu0
    %v786 = vpop.f32.mrf.mxu0
    %v787 = vadd.f32 %v699, %v786
    %v788 = vpop.f32.mrf.mxu0
    %789 = vdwg.mxu0
    %v790 = vmul.f32 %v784, 0.5
    %v791 = vmul.f32 %v787, 0.5
    %v792 = vmul.f32 %v784, 0.044715
    %v793 = vmul.f32 %v787, 0.044715
    %v794 = vmul.f32 %v792, %v784
    %v795 = vmul.f32 %v793, %v787
    %v796 = vmul.f32 %v794, %v784
    %v797 = vmul.f32 %v795, %v787
    %v798 = vadd.f32 %v784, %v796
    %v799 = vadd.f32 %v787, %v797
    %v800 = vmul.f32 %v798, 0.7978846
    %v801 = vmul.f32 %v799, 0.7978846
    %v802 = vtanh.pop %v800
    %v803 = vtanh.pop %v801
    %v804 = vadd.f32 %v802, 1.0
    %v805 = vadd.f32 %v803, 1.0
    %v806 = vmul.f32 %v790, %v804
    %v807 = vmul.f32 %v791, %v805
    %v808 = vpack.c.bf16 %v807, %v806
    %v809 = vld [vmem:[#allocation13] sm:$0xf]
    %v810 = vld [vmem:[#allocation13 + $0x4] sm:$0xf]
    %v811 = vld [vmem:[#allocation13 + $0x8] sm:$0xf]
    %v812 = vld [vmem:[#allocation13 + $0xc] sm:$0xf]
    %v813 = vld [vmem:[#allocation13 + $0x10] sm:$0xf]
    %v814 = vld [vmem:[#allocation13 + $0x14] sm:$0xf]
    %v815 = vld [vmem:[#allocation13 + $0x18] sm:$0xf]
    %v816 = vld [vmem:[#allocation13 + $0x1c] sm:$0xf]
    %v817 = vld [vmem:[#allocation13 + $0x20] sm:$0xf]
    %v818 = vld [vmem:[#allocation13 + $0x24] sm:$0xf]
    %v819 = vld [vmem:[#allocation13 + $0x28] sm:$0xf]
    %v820 = vld [vmem:[#allocation13 + $0x2c] sm:$0xf]
    %v821 = vld [vmem:[#allocation13 + $0x30] sm:$0xf]
    %v822 = vld [vmem:[#allocation13 + $0x34] sm:$0xf]
    %v823 = vld [vmem:[#allocation13 + $0x38] sm:$0xf]
    %v824 = vld [vmem:[#allocation13 + $0x3c] sm:$0xf]
    %v825 = vld [vmem:[%s10] sm:$0x1]
    %v827 = vlaneseq
    %v828 = vshrl.u32 %v827, 7
    %v829 = vsub.s32 0, %v828
    %v830 = vrot.slane %v825, %v829
    %v848 = vunpack.c.l.b16 %v809
    %v849 = vunpack.c.l.b16 %v810
    %v850 = vunpack.c.l.b16 %v811
    %v851 = vunpack.c.l.b16 %v812
    %v852 = vunpack.c.l.b16 %v813
    %v853 = vunpack.c.l.b16 %v814
    %v854 = vunpack.c.l.b16 %v815
    %v855 = vunpack.c.l.b16 %v816
    %v856 = vunpack.c.l.b16 %v817
    %v857 = vunpack.c.l.b16 %v818
    %v858 = vunpack.c.l.b16 %v819
    %v859 = vunpack.c.l.b16 %v820
    %v860 = vunpack.c.l.b16 %v821
    %v861 = vunpack.c.l.b16 %v822
    %v862 = vunpack.c.l.b16 %v823
    %v863 = vunpack.c.l.b16 %v824
    %v864 = vpack.c.b16 %v849, %v848
    %v865 = vpack.c.b16 %v851, %v850
    %v866 = vpack.c.b16 %v853, %v852
    %v867 = vpack.c.b16 %v855, %v854
    %v868 = vpack.c.b16 %v857, %v856
    %v869 = vpack.c.b16 %v859, %v858
    %v870 = vpack.c.b16 %v861, %v860
    %v871 = vpack.c.b16 %v863, %v862
    %880 = vmatprep.subr.bf16.mxu0 0
    %881 = vmatpush1.bf16.msra.mxu0 %v871
    %882 = vmatprep.subr.bf16.mxu0 0
    %883 = vmatpush1.bf16.msra.mxu0 %v870
    %884 = vmatprep.subr.bf16.mxu0 0
    %885 = vmatpush1.bf16.msra.mxu0 %v869
    %886 = vmatprep.subr.bf16.mxu0 0
    %887 = vmatpush1.bf16.msra.mxu0 %v868
    %888 = vmatprep.subr.bf16.mxu0 0
    %889 = vmatpush1.bf16.msra.mxu0 %v867
    %890 = vmatprep.subr.bf16.mxu0 0
    %891 = vmatpush1.bf16.msra.mxu0 %v866
    %892 = vmatprep.subr.bf16.mxu0 0
    %893 = vmatpush1.bf16.msra.mxu0 %v865
    %894 = vmatprep.subr.bf16.mxu0 0
    %895 = vmatpush1.bf16.msra.mxu0 %v864
    %896 = vmatprep.subr.bf16.mxu0 0
    %897 = vmatpush2.bf16.msra.mxu0 0
    %898 = vmatprep.subr.bf16.mxu0 0
    %899 = vmatpush2.bf16.msra.mxu0 0
    %900 = vmatprep.subr.bf16.mxu0 0
    %901 = vmatpush2.bf16.msra.mxu0 0
    %902 = vmatprep.subr.bf16.mxu0 0
    %903 = vmatpush2.bf16.msra.mxu0 0
    %904 = vmatprep.subr.bf16.mxu0 0
    %905 = vmatpush2.bf16.msra.mxu0 0
    %906 = vmatprep.subr.bf16.mxu0 0
    %907 = vmatpush2.bf16.msra.mxu0 0
    %908 = vmatprep.subr.bf16.mxu0 0
    %909 = vmatpush2.bf16.msra.mxu0 0
    %910 = vmatprep.subr.bf16.mxu0 0
    %911 = vmatpush2.bf16.msra.mxu0 0
    %912 = vmatprep.mubr.bf16.mxu0 0
    %913 = vmatmul.mubr.bf16.gmra.mxu0 %v808
    %v914 = vpop.f32.mrf.mxu0
    %v915 = vadd.f32 %v830, %v914
    %v916 = vpop.f32.mrf.mxu0
    %v917 = vpop.f32.mrf.mxu0
    %v918 = vadd.f32 %v830, %v917
    %v919 = vpop.f32.mrf.mxu0
    %920 = vdwg.mxu0
    %921 = vst [vmem:[#allocation14] sm:$0xff] %v915
    %922 = vst [vmem:[#allocation14 + $0x8] sm:$0xff] %v918
    // Predicated region
    $region74: #{tpu_custom_call.1} parent=1 // pred_check
      _
    $region75: #{tpu_custom_call.1} parent=1 // pred_check_branch
      %924 = sbr.rel (0) target = $region77
    $region76: #{tpu_custom_call.1} parent=1 // pred_region
      %s926 = ssub.s32 256, 256
      %927 = vsyncadd [#allocation4], %s926
      %s928 = sshll.u32 [#allocation14], 4
      %s929 = int_to_ptr.vmem [resolvable:$true] %s928
      %934 = dma.vmem_to_hbm [thread:$0]  %s929, 256, %s11, [#allocation4], 128, 128, 8
    $region77: #{tpu_custom_call.1} parent=1 // pred_fallthru
      _
    // Predicated region
    $region78: #{tpu_custom_call.1} parent=1 // pred_check
      _
    $region79: #{tpu_custom_call.1} parent=1 // pred_check_branch
      %936 = sbr.rel (0) target = $region81
    $region80: #{tpu_custom_call.1} parent=1 // pred_region
      %937 = dma.done [#allocation4], 256
    $region81: #{tpu_custom_call.1} parent=1 // pred_fallthru
      _
    %938 = vsyncpa [#allocation3], 1
    %939 = vsyncpa [#allocation6], 1
    %940 = vsyncpa [#allocation9], 1
    %941 = vsyncpa [#allocation12], 1
    %942 = vsyncpa [#allocation4], 1

</llo_original>
